<compile_context>
chip_gen: v7x
topology: tpu7x:2x2x1
jax: 0.10.0
libtpu: 0.0.40
codegen_flags: <defaults>
</compile_context>

<pallas_src>
import jax
import jax.numpy as jnp
from jax.experimental import pallas as pl
from jax.experimental.pallas import tpu as pltpu

IGNORE_INDEX = 255  # module default: LovaszSoftmax(ignore=255)


def _vmem_limit_bytes():
    try:
        cap = pltpu.get_tpu_info().vmem_capacity_bytes
        return min(int(cap * 0.85), 100 * 1024 * 1024)  # ~54 MiB v7x, 100 MiB v5e/v6e
    except Exception:
        return 48 * 1024 * 1024


# --------------------------------------------------------------------------- #
# Softmax over classes, computed once (hoisted out of the per-class grid).
# --------------------------------------------------------------------------- #
def _softmax_cn_kernel(x_ref, o_ref):
    x = x_ref[...]                                   # (C, TN) f32
    m = jnp.max(x, axis=0, keepdims=True)
    e = jnp.exp(x - m)
    o_ref[...] = e / jnp.sum(e, axis=0, keepdims=True)


def _softmax_cn(logits_cn, vmem_limit):
    c, n = logits_cn.shape
    # Lane-dense tiles; a partial last block is masked on store (per-column op).
    tn = n if n <= 2048 else 2048
    return pl.pallas_call(
        _softmax_cn_kernel,
        out_shape=jax.ShapeDtypeStruct((c, n), jnp.float32),
        grid_spec=pltpu.PrefetchScalarGridSpec(
            num_scalar_prefetch=0,
            grid=(pl.cdiv(n, tn),),
            in_specs=[pl.BlockSpec((c, tn), lambda i: (0, i))],
            out_specs=pl.BlockSpec((c, tn), lambda i: (0, i)),
        ),
        compiler_params=pltpu.CompilerParams(
            dimension_semantics=("parallel",),
            vmem_limit_bytes=vmem_limit,
        ),
    )(logits_cn)


# --------------------------------------------------------------------------- #
# Per-class Lovasz-Softmax term; grid iterates (in parallel) over classes.
# --------------------------------------------------------------------------- #
def _lovasz_kernel(probs_cn_ref, probs_nc_ref, labels_rn_ref, labels_nc_ref,
                   tri_ref, out_ref):
    c = pl.program_id(0)
    num_classes = probs_cn_ref.shape[0]
    n = probs_cn_ref.shape[1]

    labels_r = labels_rn_ref[...]                    # (1, N) int32
    labels_c = labels_nc_ref[...]                    # (N, 1) int32

    # Class-c probabilities in row (lane) and column (sublane) layout.  The
    # (N, C) array is an exact transpose of the (C, N) array and the one-hot
    # select only adds exact zeros, so row/column error vectors below are
    # bitwise identical -> the comparison matrix is a consistent strict order.
    p_row = probs_cn_ref[pl.ds(c, 1), :]                                   # (1, N)
    onehot = (jax.lax.broadcasted_iota(jnp.int32, (1, num_classes), 1) == c
              ).astype(jnp.float32)                                        # (1, C)
    p_col = jnp.sum(probs_nc_ref[...] * onehot, axis=1, keepdims=True)     # (N, 1)

    # Row-layout (lane dense) per-pixel stats.
    valid_r = labels_r != IGNORE_INDEX
    fg_r = jnp.where(jnp.logical_and(valid_r, labels_r == c), 1.0, 0.0)    # (1, N)
    nf_r = valid_r.astype(jnp.float32) - fg_r                              # (1, N)
    err_r = jnp.where(valid_r, jnp.abs(fg_r - p_row), -1.0)                # (1, N)

    # Column-layout error (same arithmetic path -> bitwise identical values).
    valid_c = labels_c != IGNORE_INDEX
    fg_c = jnp.where(jnp.logical_and(valid_c, labels_c == c), 1.0, 0.0)    # (N, 1)
    err_c = jnp.where(valid_c, jnp.abs(fg_c - p_col), -1.0)                # (N, 1)

    gts = jnp.sum(fg_r, axis=1, keepdims=True)       # (1, 1) exact fg count

    # before[j, i] == 1 iff pixel j comes strictly before pixel i in the stable
    # descending sort of errors (rows j = sublanes, columns i = lanes).  The
    # class-invariant tie-break triangle (j < i) comes from tri_ref (bf16 0/1).
    gt = err_c > err_r                                                     # (N, N)
    eq = err_c == err_r                                                    # (N, N)
    before = jnp.where(gt, 1.0, jnp.where(eq, tri_ref[...], 0.0))          # (N, N) bf16

    # Cumulative fg / non-fg counts of the strictly-before set for every pixel,
    # via a single (8, N) @ (N, N) bf16 matmul (0/1 operands are exact in bf16,
    # f32 accumulation -> exact integer counts; valid while N < 2^24).
    row_idx = jax.lax.broadcasted_iota(jnp.int32, (8, n), 0)
    slab = jnp.where(row_idx == 0, jnp.broadcast_to(fg_r, (8, n)),
                     jnp.where(row_idx == 1, jnp.broadcast_to(nf_r, (8, n)), 0.0))
    counts = jnp.dot(slab.astype(jnp.bfloat16), before,
                     preferred_element_type=jnp.float32)                   # (8, N)
    bfg = counts[0:1, :]     # fg pixels strictly before pixel i
    bnf = counts[1:2, :]     # non-fg valid pixels strictly before pixel i

    # Lovasz gradient evaluated at each pixel's own sorted position.
    # At the first sorted position jac_prev == 0 exactly (gts/gts == 1), matching
    # grad[0] = jac[0]; for ignored pixels (fg = nf = 0) the gradient is exactly 0.
    eps = 1e-12
    jac_at = 1.0 - (gts - bfg - fg_r) / jnp.maximum(gts + bnf + nf_r, eps)
    jac_prev = 1.0 - (gts - bfg) / jnp.maximum(gts + bnf, eps)
    grad = jac_at - jac_prev

    loss_c = jnp.sum(jnp.where(valid_r, err_r * grad, 0.0), axis=1, keepdims=True)
    present = (gts > 0.0).astype(jnp.float32)        # classes='present'
    loss_c = jnp.where(gts > 0.0, loss_c, 0.0)

    # Lane-dense per-class output block: [0, 0] = masked loss, [0, 1] = present.
    sub = jax.lax.broadcasted_iota(jnp.int32, (8, 128), 0)
    lane = jax.lax.broadcasted_iota(jnp.int32, (8, 128), 1)
    out = jnp.where(jnp.logical_and(sub == 0, lane == 0),
                    jnp.broadcast_to(loss_c, (8, 128)), 0.0)
    out = out + jnp.where(jnp.logical_and(sub == 0, lane == 1),
                          jnp.broadcast_to(present, (8, 128)), 0.0)
    out_ref[...] = out


def lovasz_softmax_loss(logits, labels):
    """logits: (B, C, H, W) float, labels: (B, H, W) int. Returns scalar f32 loss."""
    b, c, h, w = logits.shape
    n = b * h * w
    vmem_limit = _vmem_limit_bytes()

    # (C, N) logits with pixel order matching labels.reshape(-1).
    logits_cn = jnp.transpose(logits.astype(jnp.float32), (1, 0, 2, 3)).reshape(c, n)
    probs_cn = _softmax_cn(logits_cn, vmem_limit)    # softmax computed once
    probs_nc = jnp.transpose(probs_cn)               # exact transpose: identical bits

    labels_flat = labels.astype(jnp.int32).reshape(n)
    labels_rn = labels_flat.reshape(1, n)
    labels_nc = labels_flat.reshape(n, 1)

    # Class-invariant stable-sort tie-break triangle: tri[j, i] = (j < i).
    idx = jnp.arange(n, dtype=jnp.int32)
    tri = (idx[:, None] < idx[None, :]).astype(jnp.bfloat16)     # (N, N)

    out = pl.pallas_call(
        _lovasz_kernel,
        out_shape=jax.ShapeDtypeStruct((c * 8, 128), jnp.float32),
        grid_spec=pltpu.PrefetchScalarGridSpec(
            num_scalar_prefetch=0,
            grid=(c,),
            in_specs=[
                pl.BlockSpec((c, n), lambda i: (0, 0)),   # probs (C, N), resident
                pl.BlockSpec((n, c), lambda i: (0, 0)),   # probs (N, C), resident
                pl.BlockSpec((1, n), lambda i: (0, 0)),   # labels row
                pl.BlockSpec((n, 1), lambda i: (0, 0)),   # labels col
                pl.BlockSpec((n, n), lambda i: (0, 0)),   # tie-break triangle (bf16)
            ],
            out_specs=pl.BlockSpec((8, 128), lambda i: (i, 0)),
        ),
        compiler_params=pltpu.CompilerParams(
            dimension_semantics=("parallel",),            # classes are independent
            vmem_limit_bytes=vmem_limit,
        ),
    )(probs_cn, probs_nc, labels_rn, labels_nc, tri)

    out = out.reshape(c, 8, 128)
    losses = out[:, 0, 0]
    presents = out[:, 0, 1]
    # mean over present classes (0.0 if no class is present)
    return jnp.sum(losses) / jnp.maximum(jnp.sum(presents), 1.0)


def lovasz_softmax_ref(logits, labels):
    """Pure-JAX reference (mirrors the PyTorch lovasz_softmax, classes='present')."""
    b, c, h, w = logits.shape
    probs = jax.nn.softmax(logits.astype(jnp.float32), axis=1)
    probs = jnp.transpose(probs, (0, 2, 3, 1)).reshape(-1, c)
    lab = labels.reshape(-1)
    valid = lab != IGNORE_INDEX
    losses, presents = [], []
    for cls in range(c):
        fg = (valid & (lab == cls)).astype(jnp.float32)
        errors = jnp.where(valid, jnp.abs(fg - probs[:, cls]), -1.0)
        order = jnp.argsort(-errors)  # stable, descending; ignored pixels last
        e_s = errors[order]
        fg_s = fg[order]
        v_s = valid[order].astype(jnp.float32)
        gts = jnp.sum(fg)
        inter = gts - jnp.cumsum(fg_s)
        union = gts + jnp.cumsum(v_s - fg_s)
        jac = 1.0 - inter / jnp.maximum(union, 1e-12)
        grad = jnp.concatenate([jac[:1], jac[1:] - jac[:-1]])
        present = (gts > 0).astype(jnp.float32)
        losses.append(jnp.sum(e_s * grad) * present)
        presents.append(present)
    tot = jnp.sum(jnp.array(presents))
    return jnp.sum(jnp.array(losses)) / jnp.maximum(tot, 1.0)


if __name__ == "__main__":
    key = jax.random.PRNGKey(0)
    B, C, H, W = 2, 4, 16, 16
    k1, k2, k3 = jax.random.split(key, 3)
    logits = jax.random.normal(k1, (B, C, H, W), dtype=jnp.float32)
    labels = jax.random.randint(k2, (B, H, W), 0, C, dtype=jnp.int32)
    ignore_mask = jax.random.uniform(k3, (B, H, W)) < 0.1
    labels = jnp.where(ignore_mask, IGNORE_INDEX, labels)

    loss = jax.block_until_ready(lovasz_softmax_loss(logits, labels))
    ref = jax.block_until_ready(lovasz_softmax_ref(logits, labels))

    assert bool(jnp.isfinite(loss)), "non-finite loss"
    assert abs(float(loss) - float(ref)) < 1e-4, (float(loss), float(ref))
    print("KERNEL_OK")
</pallas_src>

<mosaic_0001>
module attributes {stable_mosaic.version = 11 : i64} {
  func.func @_softmax_cn_kernel(%arg0: i32, %arg1: memref<4x512xf32, #tpu.memory_space<vmem>>, %arg2: memref<4x512xf32, #tpu.memory_space<vmem>>) attributes {dimension_semantics = [#tpu.dimension_semantics<parallel>], iteration_bounds = array<i64: 1>, scalar_prefetch = 0 : i64, scratch_operands = 0 : i64, tpu.core_type = #tpu.core_type<tc>, window_params = [{transform_indices = @transform_0, window_bounds = array<i64: 4, 512>}, {transform_indices = @transform_1, window_bounds = array<i64: 4, 512>}]} {
    %c0 = arith.constant 0 : index
    %c0_0 = arith.constant 0 : index
    %0 = vector.load %arg1[%c0, %c0_0] : memref<4x512xf32, #tpu.memory_space<vmem>>, vector<4x512xf32>
    %cst = arith.constant dense<0xFF800000> : vector<512xf32>
    %1 = vector.multi_reduction <maximumf>, %0, %cst [0] : vector<4x512xf32> to vector<512xf32>
    %2 = vector.shape_cast %1 : vector<512xf32> to vector<1x512xf32>
    %3 = vector.broadcast %2 : vector<1x512xf32> to vector<4x512xf32>
    %4 = arith.subf %0, %3 : vector<4x512xf32>
    %5 = math.exp %4 : vector<4x512xf32>
    %cst_1 = arith.constant dense<0.000000e+00> : vector<512xf32>
    %6 = vector.multi_reduction <add>, %5, %cst_1 [0] : vector<4x512xf32> to vector<512xf32>
    %7 = vector.shape_cast %6 : vector<512xf32> to vector<1x512xf32>
    %8 = vector.broadcast %7 : vector<1x512xf32> to vector<4x512xf32>
    %9 = arith.divf %5, %8 : vector<4x512xf32>
    %c0_2 = arith.constant 0 : index
    %c0_3 = arith.constant 0 : index
    %10 = vector.load %arg2[%c0_2, %c0_3] : memref<4x512xf32, #tpu.memory_space<vmem>>, vector<4x512xf32>
    tpu.vector_store %arg2[%c0_2, %c0_3], %9 {strides = array<i32>} : memref<4x512xf32, #tpu.memory_space<vmem>>, vector<4x512xf32>,
    return
  }
  func.func @transform_0(%arg0: i32) -> (i32, i32) {
    %c0_i32 = arith.constant 0 : i32
    %c0_i32_0 = arith.constant 0 : i32
    return %c0_i32, %arg0 : i32, i32
  }
  func.func @transform_1(%arg0: i32) -> (i32, i32) {
    %c0_i32 = arith.constant 0 : i32
    %c0_i32_0 = arith.constant 0 : i32
    return %c0_i32, %arg0 : i32, i32
  }
}

</mosaic_0001>

<llo_original>
// kernel: tpu_custom_call.1
$region0: #{tpu_custom_call.1}
  #allocation0 [shape = 'u32[]', space=smem, size = 0x4, offset = 0x4, fixed_abs, tag = 'smem constant byte address 0x4 - core index']
  #allocation1 [shape = 'u32[144,128]{1,0:T(1,128)}', space=vmem, size = 0x12000, scoped, tag = 'internal scratch']
  %s0 = inlined_call_operand.hbm [shape: f32[4,512], index: 0, kind: input, shape index: {}]
  %s1 = inlined_call_operand.hbm [shape: f32[4,512], index: 1, kind: output, shape index: {}]
  %s2 = sld [smem:[#allocation0]]
  $region18: #{tpu_custom_call.1} parent=0
    _
  %s4 = ssub.s32 1, %s2
  %s5 = scalar_select 0, %s4, %s2
  $region1: #{tpu_custom_call.1} parent=0
    #allocation2 [shape = 'u8[8192]{0}', space=vmem, size = 0x2000, scoped, tag = 'input window, operand 0, single buffered']
    #allocation3 [shape = 's32[1]{0}', space=sflag, size = 0x4, scoped, tag = 'scoped memory for tpu_custom_call.1']
    #allocation4 [shape = 's32[1]{0}', space=sflag, size = 0x4, scoped, tag = 'scoped memory for tpu_custom_call.1']
    #allocation5 [shape = 'u8[8192]{0}', space=vmem, size = 0x2000, scoped, tag = 'output window, operand 0, single buffered']
    %6 = vsyncpa [#allocation3], 0
    %7 = vsyncpa [#allocation4], 0
    // Predicated region
    $region2: #{tpu_custom_call.1} parent=1 // pred_check
      _
    $region3: #{tpu_custom_call.1} parent=1 // pred_check_branch
      %9 = sbr.rel (0) target = $region5
    $region4: #{tpu_custom_call.1} parent=1 // pred_region
      %s11 = ssub.s32 256, 256
      %12 = vsyncadd [#allocation3], %s11
      %s14 = sshll.u32 [#allocation2], 4
      %s15 = int_to_ptr.vmem [resolvable:$true] %s14
      %17 = dma.hbm_to_vmem [thread:$0]  %s0, 256, %s15, [#allocation3]
    $region5: #{tpu_custom_call.1} parent=1 // pred_fallthru
      _
    // Predicated region
    $region6: #{tpu_custom_call.1} parent=1 // pred_check
      _
    $region7: #{tpu_custom_call.1} parent=1 // pred_check_branch
      %19 = sbr.rel (0) target = $region9
    $region8: #{tpu_custom_call.1} parent=1 // pred_region
      %20 = dma.done [#allocation3], 256
    $region9: #{tpu_custom_call.1} parent=1 // pred_fallthru
      _
    %v21 = vld [vmem:[#allocation2] sm:$0xff]
    %v22 = vld [vmem:[#allocation2 + $0x8] sm:$0xff]
    %v25 = vcombine.high %v21, %v21
    %v26 = vcombine.high %v22, %v22
    %vm29 = vcmask 1043456
    %v30 = vsel %vm29, %v21, -inf
    %v31 = vrot.slane %v30, 4
    %v32 = vmax.f32 %v30, %v31
    %v33 = vrot.slane %v32, 2
    %v34 = vmax.f32 %v32, %v33
    %v35 = vrot.slane %v34, 1
    %v36 = vmax.f32 %v34, %v35
    %v37 = vsel %vm29, %v25, -inf
    %v38 = vrot.slane %v37, 4
    %v39 = vmax.f32 %v37, %v38
    %v40 = vrot.slane %v39, 2
    %v41 = vmax.f32 %v39, %v40
    %v42 = vrot.slane %v41, 1
    %v43 = vmax.f32 %v41, %v42
    %v44 = vsel %vm29, %v22, -inf
    %v45 = vrot.slane %v44, 4
    %v46 = vmax.f32 %v44, %v45
    %v47 = vrot.slane %v46, 2
    %v48 = vmax.f32 %v46, %v47
    %v49 = vrot.slane %v48, 1
    %v50 = vmax.f32 %v48, %v49
    %v51 = vsel %vm29, %v26, -inf
    %v52 = vrot.slane %v51, 4
    %v53 = vmax.f32 %v51, %v52
    %v54 = vrot.slane %v53, 2
    %v55 = vmax.f32 %v53, %v54
    %v56 = vrot.slane %v55, 1
    %v57 = vmax.f32 %v55, %v56
    %v62 = vcombine.low %v36, %v43
    %v63 = vcombine.low %v50, %v57
    %v66 = vsub.f32 %v21, %v62
    %v67 = vsub.f32 %v22, %v63
    %v68 = vmul.f32 %v66, 1.442695
    %v69 = vpow.pop %v68
    %v70 = vmul.f32 %v67, 1.442695
    %v71 = vpow.pop %v70
    %v74 = vcombine.high %v69, %v69
    %v75 = vcombine.high %v71, %v71
    %v78 = vsel %vm29, %v69, 0.0
    %v79 = vrot.slane %v78, 4
    %v80 = vadd.f32 %v78, %v79
    %v81 = vrot.slane %v80, 2
    %v82 = vadd.f32 %v80, %v81
    %v83 = vrot.slane %v82, 1
    %v84 = vadd.f32 %v82, %v83
    %v85 = vsel %vm29, %v74, 0.0
    %v86 = vrot.slane %v85, 4
    %v87 = vadd.f32 %v85, %v86
    %v88 = vrot.slane %v87, 2
    %v89 = vadd.f32 %v87, %v88
    %v90 = vrot.slane %v89, 1
    %v91 = vadd.f32 %v89, %v90
    %v92 = vsel %vm29, %v71, 0.0
    %v93 = vrot.slane %v92, 4
    %v94 = vadd.f32 %v92, %v93
    %v95 = vrot.slane %v94, 2
    %v96 = vadd.f32 %v94, %v95
    %v97 = vrot.slane %v96, 1
    %v98 = vadd.f32 %v96, %v97
    %v99 = vsel %vm29, %v75, 0.0
    %v100 = vrot.slane %v99, 4
    %v101 = vadd.f32 %v99, %v100
    %v102 = vrot.slane %v101, 2
    %v103 = vadd.f32 %v101, %v102
    %v104 = vrot.slane %v103, 1
    %v105 = vadd.f32 %v103, %v104
    %v110 = vcombine.low %v84, %v91
    %v111 = vcombine.low %v98, %v105
    %v114 = vrcp.pop %v110
    %v115 = vmul.f32 %v69, %v114
    %v116 = vrcp.pop %v111
    %v117 = vmul.f32 %v71, %v116
    %118 = vst [vmem:[#allocation5] sm:$0xff] %v115
    %119 = vst [vmem:[#allocation5 + $0x8] sm:$0xff] %v117
    // Predicated region
    $region10: #{tpu_custom_call.1} parent=1 // pred_check
      _
    $region11: #{tpu_custom_call.1} parent=1 // pred_check_branch
      %121 = sbr.rel (0) target = $region13
    $region12: #{tpu_custom_call.1} parent=1 // pred_region
      %s123 = ssub.s32 256, 256
      %124 = vsyncadd [#allocation4], %s123
      %s126 = sshll.u32 [#allocation5], 4
      %s127 = int_to_ptr.vmem [resolvable:$true] %s126
      %129 = dma.vmem_to_hbm [thread:$0]  %s127, 256, %s1, [#allocation4]
    $region13: #{tpu_custom_call.1} parent=1 // pred_fallthru
      _
    // Predicated region
    $region14: #{tpu_custom_call.1} parent=1 // pred_check
      _
    $region15: #{tpu_custom_call.1} parent=1 // pred_check_branch
      %131 = sbr.rel (0) target = $region17
    $region16: #{tpu_custom_call.1} parent=1 // pred_region
      %132 = dma.done [#allocation4], 256
    $region17: #{tpu_custom_call.1} parent=1 // pred_fallthru
      _
    %133 = vsyncpa [#allocation3], 1
    %134 = vsyncpa [#allocation4], 1

</llo_original>
